<compile_context>
chip_gen: v7x
topology: tpu7x:2x2x1
jax: 0.10.0
libtpu: 0.0.40
codegen_flags: <defaults>
</compile_context>

<pallas_src>
import jax
import jax.numpy as jnp
from jax import lax
from jax.experimental import pallas as pl
from jax.experimental.pallas import tpu as pltpu

_EPS = 1e-12


# ----------------------------------------------------------------------------
# Small helpers
# ----------------------------------------------------------------------------
def _round_up(x, m):
    return (x + m - 1) // m * m


def _pick_tile(dim, align, cap):
    """Largest `align`-aligned tile <= cap that minimizes padding of `dim`."""
    nblk = -(-dim // cap)
    return min(_round_up(-(-dim // nblk), align), cap)


def _pad2(a, rows, cols):
    pr, pc = rows - a.shape[0], cols - a.shape[1]
    if pr or pc:
        a = jnp.pad(a, ((0, pr), (0, pc)))
    return a


def _vmem_capacity_bytes():
    try:
        return int(pltpu.get_tpu_info().vmem_capacity_bytes)
    except Exception:
        return 64 << 20  # conservative fallback: v7x physical VMEM per TC


def _compiler_params(semantics, est_bytes):
    cap = _vmem_capacity_bytes()
    limit = int(min(max(2 * est_bytes + (8 << 20), 32 << 20), int(0.85 * cap)))
    return pltpu.CompilerParams(dimension_semantics=semantics,
                                vmem_limit_bytes=limit)


def _maybe_buffered_spec(shape, index_map, depth):
    """BlockSpec with deeper pipelining when the runtime supports it."""
    try:
        return pl.BlockSpec(shape, index_map, pipeline_mode=pl.Buffered(depth))
    except (TypeError, AttributeError):
        return pl.BlockSpec(shape, index_map)


# ----------------------------------------------------------------------------
# Kernel 1: twin forward pass (shared-weight linear, twin axis folded into rows)
# ----------------------------------------------------------------------------
def _linear_kernel(x_ref, w_ref, b_ref, o_ref):
    # o_ref is f32 and resident across the K axis: accumulate directly into it
    # (no separate VMEM scratch, no epilogue copy/cast).
    @pl.when(pl.program_id(2) == 0)
    def _():
        o_ref[...] = jnp.zeros_like(o_ref)

    o_ref[...] += jnp.dot(x_ref[...], w_ref[...],
                          preferred_element_type=jnp.float32)

    @pl.when(pl.program_id(2) == pl.num_programs(2) - 1)
    def _():
        o_ref[...] += b_ref[...]


def twins_forward(x, w, b, stream_dtype=None):
    """x: [B, 2, N] -> [B, 2, M] with y[:, t] = x[:, t] @ w + b (shared w, b)."""
    n_batch, two, n_feat = x.shape
    assert two == 2
    m_feat = w.shape[1]
    rows = 2 * n_batch
    out_dtype = jnp.promote_types(x.dtype, w.dtype)
    sdt = jnp.dtype(stream_dtype) if stream_dtype is not None else jnp.dtype(out_dtype)
    isz = jnp.dtype(sdt).itemsize

    # (8,128)-aligned, lane-dense 512-class tiles (forward is HBM-bound on W:
    # ~85% of HBM roofline at 512 tiles vs ~63% at 256).
    tm = _pick_tile(rows, 8, 512)
    tk = _pick_tile(n_feat, 128, 1024)
    tn = _pick_tile(m_feat, 128, 512)
    R = _round_up(rows, tm)
    K = _round_up(n_feat, tk)
    M = _round_up(m_feat, tn)

    x2p = _pad2(x.reshape(rows, n_feat), R, K).astype(sdt)  # twin axis folds into rows (free)
    wp = _pad2(w, K, M).astype(sdt)
    bp = jnp.pad(b.astype(jnp.float32), (0, M - m_feat)).reshape(1, M)

    est = 2 * (tm * tk + tk * tn) * isz + 2 * tn * 4 + 2 * tm * tn * 4
    grid = (R // tm, M // tn, K // tk)
    yp = pl.pallas_call(
        _linear_kernel,
        out_shape=jax.ShapeDtypeStruct((R, M), jnp.float32),
        grid_spec=pltpu.PrefetchScalarGridSpec(
            num_scalar_prefetch=0,
            grid=grid,
            in_specs=[
                pl.BlockSpec((tm, tk), lambda i, j, k: (i, k)),
                pl.BlockSpec((tk, tn), lambda i, j, k: (k, j)),   # shared W
                pl.BlockSpec((1, tn), lambda i, j, k: (0, j)),    # shared bias
            ],
            out_specs=pl.BlockSpec((tm, tn), lambda i, j, k: (i, j)),
        ),
        compiler_params=_compiler_params(("parallel", "parallel", "arbitrary"), est),
        cost_estimate=pl.CostEstimate(
            flops=2 * R * M * K,
            transcendentals=0,
            bytes_accessed=isz * (R * K + K * M) + 4 * R * M),
    )(x2p, wp, bp)

    y = yp[:rows, :m_feat].reshape(n_batch, 2, m_feat)
    return y.astype(out_dtype)


# ----------------------------------------------------------------------------
# Kernel 2: composed cross-correlation = normalize pre-pass + pure contraction
# ----------------------------------------------------------------------------
def _normalize_kernel(ya_ref, yb_ref, za_ref, zb_ref):
    ya = ya_ref[...].astype(jnp.float32)
    ya = ya - jnp.mean(ya, axis=0, keepdims=True)
    za_ref[...] = ya * lax.rsqrt(jnp.sum(ya * ya, axis=0, keepdims=True) + _EPS)
    yb = yb_ref[...].astype(jnp.float32)
    yb = yb - jnp.mean(yb, axis=0, keepdims=True)
    zb_ref[...] = yb * lax.rsqrt(jnp.sum(yb * yb, axis=0, keepdims=True) + _EPS)


def _xcorr_contract_kernel(za_ref, zb_ref, o_ref):
    # Pure batch-contraction (no per-tile renormalization, no transposes).
    o_ref[...] = lax.dot_general(za_ref[...], zb_ref[...],
                                 (((0,), (0,)), ((), ())),
                                 preferred_element_type=jnp.float32)


def twins_xcorr(y):
    """y: [B, 2, M] -> [M, M] cross-correlation of twin outputs."""
    n_batch, two, m_feat = y.shape
    assert two == 2
    ya, yb = y[:, 0], y[:, 1]

    # Big lane-dense tiles; shrink the cap only if (B, t) slabs strain VMEM.
    cap_t = 512
    while cap_t > 128 and 4 * (6 * n_batch * cap_t + 2 * cap_t * cap_t) > (24 << 20):
        cap_t //= 2
    t = _pick_tile(m_feat, 128, cap_t)
    Mp = _round_up(m_feat, t)
    ya_p = _pad2(ya, n_batch, Mp)
    yb_p = _pad2(yb, n_batch, Mp)

    # Pass 1: center + L2-normalize every column ONCE (hoisted out of the
    # (Mp/t)^2 tile loop of the contraction).
    norm_est = 4 * (8 * n_batch * t)
    za, zb = pl.pallas_call(
        _normalize_kernel,
        out_shape=(jax.ShapeDtypeStruct((n_batch, Mp), jnp.float32),
                   jax.ShapeDtypeStruct((n_batch, Mp), jnp.float32)),
        grid_spec=pltpu.PrefetchScalarGridSpec(
            num_scalar_prefetch=0,
            grid=(Mp // t,),
            in_specs=[pl.BlockSpec((n_batch, t), lambda i: (0, i)),
                      pl.BlockSpec((n_batch, t), lambda i: (0, i))],
            out_specs=[pl.BlockSpec((n_batch, t), lambda i: (0, i)),
                       pl.BlockSpec((n_batch, t), lambda i: (0, i))],
        ),
        compiler_params=_compiler_params(("parallel",), norm_est),
        cost_estimate=pl.CostEstimate(
            flops=6 * n_batch * Mp,
            transcendentals=2 * Mp,
            bytes_accessed=4 * 4 * n_batch * Mp),
    )(ya_p, yb_p)

    # Pass 2: tiled (Mp, Mp) contraction over batch; deeper buffering on the
    # operand that is restreamed every inner step.
    con_est = 4 * (5 * n_batch * t + 2 * t * t)
    c = pl.pallas_call(
        _xcorr_contract_kernel,
        out_shape=jax.ShapeDtypeStruct((Mp, Mp), jnp.float32),
        grid_spec=pltpu.PrefetchScalarGridSpec(
            num_scalar_prefetch=0,
            grid=(Mp // t, Mp // t),
            in_specs=[
                pl.BlockSpec((n_batch, t), lambda i, j: (0, i)),
                _maybe_buffered_spec((n_batch, t), lambda i, j: (0, j), 3),
            ],
            out_specs=pl.BlockSpec((t, t), lambda i, j: (i, j)),
        ),
        compiler_params=_compiler_params(("parallel", "parallel"), con_est),
        cost_estimate=pl.CostEstimate(
            flops=2 * n_batch * Mp * Mp,
            transcendentals=0,
            bytes_accessed=4 * (2 * n_batch * Mp * (Mp // t) + Mp * Mp)),
    )(za, zb)
    return c[:m_feat, :m_feat].astype(y.dtype)


# ----------------------------------------------------------------------------
# Kernel 3: fused forward + xcorr (y never materialized in HBM, x read once)
# ----------------------------------------------------------------------------
def _make_fused_kernel(n_batch, rows, rp):
    inv_b = 1.0 / float(n_batch)

    def kernel(x_ref, w_ref, b_ref, c_ref, z_acc):
        k = pl.program_id(0)

        @pl.when(k == 0)
        def _():
            z_acc[...] = jnp.zeros_like(z_acc)

        # Folded/interleaved rows: even rows = twin a, odd rows = twin b.
        z_acc[...] += jnp.dot(x_ref[...], w_ref[...],
                              preferred_element_type=jnp.float32)

        @pl.when(k == pl.num_programs(0) - 1)
        def _():
            # Bias cancels under centering; kept for fidelity with forward.
            z = z_acc[...] + b_ref[...]                              # (Rp, Mp)
            row = lax.broadcasted_iota(jnp.int32, (rp, 1), 0)
            valid = row < rows
            mask_a = jnp.where(valid & (row % 2 == 0), 1.0, 0.0)    # twin a rows
            mask_b = jnp.where(valid & (row % 2 == 1), 1.0, 0.0)    # twin b rows
            mean_a = jnp.sum(mask_a * z, axis=0, keepdims=True) * inv_b
            mean_b = jnp.sum(mask_b * z, axis=0, keepdims=True) * inv_b
            zca = z - mean_a
            zcb = z - mean_b
            na2 = jnp.sum(mask_a * zca * zca, axis=0, keepdims=True)
            nb2 = jnp.sum(mask_b * zcb * zcb, axis=0, keepdims=True)
            zan = zca * lax.rsqrt(na2 + _EPS)
            zbn = zcb * lax.rsqrt(nb2 + _EPS)
            # Pair row 2b (twin a) with row 2b+1 (twin b) with an exact 0/1
            # shift-select matmul: P[r, s] = 1 iff r even, r < rows, s = r + 1.
            r_i = lax.broadcasted_iota(jnp.int32, (rp, rp), 0)
            s_i = lax.broadcasted_iota(jnp.int32, (rp, rp), 1)
            p = jnp.where((s_i == r_i + 1) & (r_i % 2 == 0) & (r_i < rows),
                          1.0, 0.0)
            zb_pair = jnp.dot(p, zbn, preferred_element_type=jnp.float32)
            # C[i, j] = sum_b ya_n[b, i] * yb_n[b, j]  (contract over rows).
            c_ref[...] = lax.dot_general(zan, zb_pair,
                                         (((0,), (0,)), ((), ())),
                                         preferred_element_type=jnp.float32)

    return kernel


def twins_xcorr_on(x, w, b, stream_dtype=None):
    """x: [B, 2, N] -> [M, M] cross-correlation of the twin forward outputs."""
    n_batch, two, n_feat = x.shape
    assert two == 2
    m_feat = w.shape[1]
    rows = 2 * n_batch
    out_dtype = jnp.promote_types(x.dtype, w.dtype)
    sdt = jnp.dtype(stream_dtype) if stream_dtype is not None else jnp.dtype(out_dtype)
    isz = jnp.dtype(sdt).itemsize

    tk = _pick_tile(n_feat, 128, 1024)
    K = _round_up(n_feat, tk)
    Rp = _round_up(rows, 8)
    Mp = _round_up(m_feat, 128)

    cap = _vmem_capacity_bytes()
    # Fused working set: double-buffered x/W streams, bias, resident C output,
    # f32 accumulator, pairing matrix, epilogue temporaries (conservative).
    est = (2 * Rp * tk * isz + 2 * tk * Mp * isz + 2 * Mp * 4
           + 2 * Mp * Mp * 4 + Rp * Mp * 4 + Rp * Rp * 4 + 6 * Rp * Mp * 4)
    # TODO(synk): on dual-TensorCore parts (v7x) the fused kernel's single
    # "arbitrary" K axis runs on one core; prefer the composed (megacore-
    # parallel) path sooner when the forward matmul dominates.
    if est > int(0.70 * cap):
        return twins_xcorr(twins_forward(x, w, b, stream_dtype=stream_dtype))

    # x streamed directly in its natural folded layout (rows interleave twin
    # a / twin b) -- no strided x[:,0]/x[:,1] HBM gather+copies.
    x2p = _pad2(x.reshape(rows, n_feat), Rp, K).astype(sdt)
    wp = _pad2(w, K, Mp).astype(sdt)
    bp = jnp.pad(b.astype(jnp.float32), (0, Mp - m_feat)).reshape(1, Mp)

    c = pl.pallas_call(
        _make_fused_kernel(n_batch, rows, Rp),
        out_shape=jax.ShapeDtypeStruct((Mp, Mp), jnp.float32),
        grid_spec=pltpu.PrefetchScalarGridSpec(
            num_scalar_prefetch=0,
            grid=(K // tk,),
            in_specs=[
                pl.BlockSpec((Rp, tk), lambda k: (0, k)),           # folded x
                pl.BlockSpec((tk, Mp), lambda k: (k, 0)),           # shared W
                pl.BlockSpec((1, Mp), lambda k: (0, 0)),            # shared bias
            ],
            out_specs=pl.BlockSpec((Mp, Mp), lambda k: (0, 0)),
            scratch_shapes=[pltpu.VMEM((Rp, Mp), jnp.float32)],
        ),
        compiler_params=_compiler_params(("arbitrary",), est),
        cost_estimate=pl.CostEstimate(
            flops=2 * Rp * K * Mp + 2 * Rp * Rp * Mp + 2 * Rp * Mp * Mp,
            transcendentals=2 * Mp,
            bytes_accessed=isz * (Rp * K + K * Mp) + 4 * Mp * Mp),
    )(x2p, wp, bp)
    return c[:m_feat, :m_feat].astype(out_dtype)


# ----------------------------------------------------------------------------
# Pure-JAX reference + self-check
# ----------------------------------------------------------------------------
def _ref_forward(x, w, b):
    ya = x[:, 0] @ w + b
    yb = x[:, 1] @ w + b
    return jnp.stack([ya, yb], axis=1)


def _ref_xcorr(y):
    ya, yb = y[:, 0].astype(jnp.float32), y[:, 1].astype(jnp.float32)
    ya = ya - ya.mean(axis=0)
    yb = yb - yb.mean(axis=0)
    yab = ya.T @ yb
    na = jnp.linalg.norm(ya, axis=0)
    nb = jnp.linalg.norm(yb, axis=0)
    return yab / (na[:, None] * nb[None, :])


if __name__ == "__main__":
    key = jax.random.PRNGKey(0)

    # Lane-aligned, lane-unaligned, and non-multiple-of-8 batch shapes
    # (the last exercises the padded-row masking in the fused kernel).
    for (n_batch, n_feat, m_feat) in [(8, 128, 128), (8, 96, 160), (6, 100, 130)]:
        key, kx, kw, kb = jax.random.split(key, 4)
        x = jax.random.normal(kx, (n_batch, 2, n_feat), dtype=jnp.float32)
        w = jax.random.normal(kw, (n_feat, m_feat), dtype=jnp.float32) * 0.1
        b = jax.random.normal(kb, (m_feat,), dtype=jnp.float32) * 0.1

        y = jax.block_until_ready(twins_forward(x, w, b))          # [B, 2, M]
        c = jax.block_until_ready(twins_xcorr(y))                  # [M, M]
        c_fused = jax.block_until_ready(twins_xcorr_on(x, w, b))   # [M, M] fused

        y_ref = _ref_forward(x, w, b)
        c_ref = _ref_xcorr(y_ref)
        assert jnp.allclose(y, y_ref, atol=1e-4, rtol=1e-4), "forward mismatch"
        assert jnp.allclose(c, c_ref, atol=1e-4, rtol=1e-4), "xcorr mismatch"
        assert jnp.allclose(c_fused, c_ref, atol=1e-4, rtol=1e-4), "fused xcorr mismatch"

        # bf16-streamed forward (HBM-traffic perf path): f32 accumulation,
        # looser tolerance from the bf16 rounding of x / W.
        y16 = jax.block_until_ready(
            twins_forward(x, w, b, stream_dtype=jnp.bfloat16))
        assert jnp.allclose(y16, y_ref, atol=5e-2, rtol=5e-2), "bf16 forward mismatch"

    print("KERNEL_OK")
</pallas_src>

<mosaic_0001>
module attributes {stable_mosaic.version = 11 : i64} {
  func.func @_linear_kernel(%arg0: i32, %arg1: i32, %arg2: i32, %arg3: memref<16x128xf32, #tpu.memory_space<vmem>>, %arg4: memref<128x128xf32, #tpu.memory_space<vmem>>, %arg5: memref<1x128xf32, #tpu.memory_space<vmem>>, %arg6: memref<16x128xf32, #tpu.memory_space<vmem>>) attributes {dimension_semantics = [#tpu.dimension_semantics<parallel>, #tpu.dimension_semantics<parallel>, #tpu.dimension_semantics<arbitrary>], iteration_bounds = array<i64: 1, 1, 1>, scalar_prefetch = 0 : i64, scratch_operands = 0 : i64, tpu.core_type = #tpu.core_type<tc>, window_params = [{transform_indices = @transform_0, window_bounds = array<i64: 16, 128>}, {transform_indices = @transform_1, window_bounds = array<i64: 128, 128>}, {transform_indices = @transform_2, window_bounds = array<i64: 1, 128>}, {transform_indices = @transform_3, window_bounds = array<i64: 16, 128>}]} {
    %c0_i32 = arith.constant 0 : i32
    %0 = arith.cmpi eq, %arg2, %c0_i32 : i32
    %1 = arith.extui %0 : i1 to i32
    %c0_i32_0 = arith.constant 0 : i32
    %2 = arith.cmpi ne, %1, %c0_i32_0 : i32
    scf.if %2 {
      %cst_10 = arith.constant 0.000000e+00 : f32
      %12 = vector.broadcast %cst_10 : f32 to vector<16x128xf32>
      %c0_11 = arith.constant 0 : index
      %c0_12 = arith.constant 0 : index
      %13 = vector.load %arg6[%c0_11, %c0_12] : memref<16x128xf32, #tpu.memory_space<vmem>>, vector<16x128xf32>
      tpu.vector_store %arg6[%c0_11, %c0_12], %12 {strides = array<i32>} : memref<16x128xf32, #tpu.memory_space<vmem>>, vector<16x128xf32>,
    } else {
    }
    %c0 = arith.constant 0 : index
    %c0_1 = arith.constant 0 : index
    %3 = vector.load %arg6[%c0, %c0_1] : memref<16x128xf32, #tpu.memory_space<vmem>>, vector<16x128xf32>
    %c0_2 = arith.constant 0 : index
    %c0_3 = arith.constant 0 : index
    %4 = vector.load %arg3[%c0_2, %c0_3] : memref<16x128xf32, #tpu.memory_space<vmem>>, vector<16x128xf32>
    %c0_4 = arith.constant 0 : index
    %c0_5 = arith.constant 0 : index
    %5 = vector.load %arg4[%c0_4, %c0_5] : memref<128x128xf32, #tpu.memory_space<vmem>>, vector<128x128xf32>
    %cst = arith.constant dense<0.000000e+00> : vector<16x128xf32>
    %6 = tpu.matmul %4, %5, %cst {dimension_numbers = #tpu.dot_dimension_numbers<[1], [0], [0], [1], [0, 0, 1, 1], [], []>} : vector<16x128xf32>, vector<128x128xf32>, vector<16x128xf32> -> vector<16x128xf32>
    %7 = arith.addf %3, %6 : vector<16x128xf32>
    %c0_6 = arith.constant 0 : index
    %c0_7 = arith.constant 0 : index
    %8 = vector.load %arg6[%c0_6, %c0_7] : memref<16x128xf32, #tpu.memory_space<vmem>>, vector<16x128xf32>
    tpu.vector_store %arg6[%c0_6, %c0_7], %7 {strides = array<i32>} : memref<16x128xf32, #tpu.memory_space<vmem>>, vector<16x128xf32>,
    %c0_i32_8 = arith.constant 0 : i32
    %9 = arith.cmpi eq, %arg2, %c0_i32_8 : i32
    %10 = arith.extui %9 : i1 to i32
    %c0_i32_9 = arith.constant 0 : i32
    %11 = arith.cmpi ne, %10, %c0_i32_9 : i32
    scf.if %11 {
      %c0_10 = arith.constant 0 : index
      %c0_11 = arith.constant 0 : index
      %12 = vector.load %arg6[%c0_10, %c0_11] : memref<16x128xf32, #tpu.memory_space<vmem>>, vector<16x128xf32>
      %c0_12 = arith.constant 0 : index
      %c0_13 = arith.constant 0 : index
      %13 = vector.load %arg5[%c0_12, %c0_13] : memref<1x128xf32, #tpu.memory_space<vmem>>, vector<1x128xf32>
      %14 = vector.broadcast %13 : vector<1x128xf32> to vector<16x128xf32>
      %15 = arith.addf %12, %14 : vector<16x128xf32>
      %c0_14 = arith.constant 0 : index
      %c0_15 = arith.constant 0 : index
      %16 = vector.load %arg6[%c0_14, %c0_15] : memref<16x128xf32, #tpu.memory_space<vmem>>, vector<16x128xf32>
      tpu.vector_store %arg6[%c0_14, %c0_15], %15 {strides = array<i32>} : memref<16x128xf32, #tpu.memory_space<vmem>>, vector<16x128xf32>,
    } else {
    }
    return
  }
  func.func @transform_0(%arg0: i32, %arg1: i32, %arg2: i32) -> (i32, i32) {
    %c0_i32 = arith.constant 0 : i32
    return %arg0, %arg2 : i32, i32
  }
  func.func @transform_1(%arg0: i32, %arg1: i32, %arg2: i32) -> (i32, i32) {
    %c0_i32 = arith.constant 0 : i32
    return %arg2, %arg1 : i32, i32
  }
  func.func @transform_2(%arg0: i32, %arg1: i32, %arg2: i32) -> (i32, i32) {
    %c0_i32 = arith.constant 0 : i32
    %c0_i32_0 = arith.constant 0 : i32
    return %c0_i32, %arg1 : i32, i32
  }
  func.func @transform_3(%arg0: i32, %arg1: i32, %arg2: i32) -> (i32, i32) {
    %c0_i32 = arith.constant 0 : i32
    return %arg0, %arg1 : i32, i32
  }
}

</mosaic_0001>

<llo_original>
// kernel: tpu_custom_call.1
$region0: #{tpu_custom_call.1}
  #allocation0 [shape = 'u32[]', space=smem, size = 0x4, offset = 0x4, fixed_abs, tag = 'smem constant byte address 0x4 - core index']
  #allocation1 [shape = 'u32[144,128]{1,0:T(1,128)}', space=vmem, size = 0x12000, scoped, tag = 'internal scratch']
  %s0 = inlined_call_operand.hbm [shape: f32[16,128], index: 0, kind: input, shape index: {}]
  %s1 = inlined_call_operand.hbm [shape: f32[128,128], index: 1, kind: input, shape index: {}]
  %s2 = inlined_call_operand.vmem [shape: f32[1,128], index: 2, kind: input, shape index: {}]
  %s3 = inlined_call_operand.hbm [shape: f32[16,128], index: 3, kind: output, shape index: {}]
  %s4 = sld [smem:[#allocation0]]
  $region38: #{tpu_custom_call.1} parent=0
    _
  %s6 = ssub.s32 1, %s4
  %s7 = scalar_select 0, %s6, %s4
  $region1: #{tpu_custom_call.1} parent=0
    #allocation2 [shape = 'u8[8192]{0}', space=vmem, size = 0x2000, scoped, tag = 'input window, operand 0, single buffered']
    #allocation3 [shape = 's32[1]{0}', space=sflag, size = 0x4, scoped, tag = 'scoped memory for tpu_custom_call.1']
    #allocation4 [shape = 's32[1]{0}', space=sflag, size = 0x4, scoped, tag = 'scoped memory for tpu_custom_call.1']
    #allocation5 [shape = 'u8[65536]{0}', space=vmem, size = 0x10000, scoped, tag = 'input window, operand 1, single buffered']
    #allocation6 [shape = 's32[1]{0}', space=sflag, size = 0x4, scoped, tag = 'scoped memory for tpu_custom_call.1']
    #allocation7 [shape = 'u8[8192]{0}', space=vmem, size = 0x2000, scoped, tag = 'output window, operand 0, single buffered']
    %8 = vsyncpa [#allocation3], 0
    %9 = vsyncpa [#allocation6], 0
    %10 = vsyncpa [#allocation4], 0
    // Predicated region
    $region2: #{tpu_custom_call.1} parent=1 // pred_check
      _
    $region3: #{tpu_custom_call.1} parent=1 // pred_check_branch
      %12 = sbr.rel (0) target = $region5
    $region4: #{tpu_custom_call.1} parent=1 // pred_region
      %s14 = ssub.s32 256, 256
      %15 = vsyncadd [#allocation3], %s14
      %s16 = sshll.u32 [#allocation2], 4
      %s17 = int_to_ptr.vmem [resolvable:$true] %s16
      %22 = dma.hbm_to_vmem [thread:$0]  %s0, 256, %s17, [#allocation3], 128, 128, 8
    $region5: #{tpu_custom_call.1} parent=1 // pred_fallthru
      _
    // Predicated region
    $region6: #{tpu_custom_call.1} parent=1 // pred_check
      _
    $region7: #{tpu_custom_call.1} parent=1 // pred_check_branch
      %24 = sbr.rel (0) target = $region9
    $region8: #{tpu_custom_call.1} parent=1 // pred_region
      %s26 = ssub.s32 2048, 2048
      %27 = vsyncadd [#allocation6], %s26
      %s28 = sshll.u32 [#allocation5], 4
      %s29 = int_to_ptr.vmem [resolvable:$true] %s28
      %34 = dma.hbm_to_vmem [thread:$0]  %s1, 2048, %s29, [#allocation6], 128, 128, 8
    $region9: #{tpu_custom_call.1} parent=1 // pred_fallthru
      _
    // Predicated region
    $region10: #{tpu_custom_call.1} parent=1 // pred_check
      _
    $region11: #{tpu_custom_call.1} parent=1 // pred_check_branch
      %36 = sbr.rel (0) target = $region13
    $region12: #{tpu_custom_call.1} parent=1 // pred_region
      _
    $region13: #{tpu_custom_call.1} parent=1 // pred_fallthru
      _
    // Predicated region
    $region14: #{tpu_custom_call.1} parent=1 // pred_check
      _
    $region15: #{tpu_custom_call.1} parent=1 // pred_check_branch
      %38 = sbr.rel (0) target = $region17
    $region16: #{tpu_custom_call.1} parent=1 // pred_region
      %39 = dma.done [#allocation3], 256
    $region17: #{tpu_custom_call.1} parent=1 // pred_fallthru
      _
    // Predicated region
    $region18: #{tpu_custom_call.1} parent=1 // pred_check
      _
    $region19: #{tpu_custom_call.1} parent=1 // pred_check_branch
      %41 = sbr.rel (0) target = $region21
    $region20: #{tpu_custom_call.1} parent=1 // pred_region
      %42 = dma.done [#allocation6], 2048
    $region21: #{tpu_custom_call.1} parent=1 // pred_fallthru
      _
    %p43 = scmp.eq.s32.totalorder 0, 0
    // Predicated region
    $region22: #{tpu_custom_call.1} parent=1 // pred_check
      %p44 = pneg %p43
    $region23: #{tpu_custom_call.1} parent=1 // pred_check_branch
      %46 = sbr.rel (%p44) target = $region25
    $region24: #{tpu_custom_call.1} parent=1 // pred_region
      %47 = vst [vmem:[#allocation7] sm:$0xff] 0.0
      %48 = vst [vmem:[#allocation7 + $0x8] sm:$0xff] 0.0
    $region25: #{tpu_custom_call.1} parent=1 // pred_fallthru
      _
    %v49 = vld [vmem:[#allocation7] sm:$0xff]
    %v50 = vld [vmem:[#allocation7 + $0x8] sm:$0xff]
    %v51 = vld [vmem:[#allocation2] sm:$0xff]
    %v52 = vld [vmem:[#allocation2 + $0x8] sm:$0xff]
    %v53 = vld [vmem:[#allocation5] sm:$0xff]
    %v54 = vld [vmem:[#allocation5 + $0x8] sm:$0xff]
    %v55 = vld [vmem:[#allocation5 + $0x10] sm:$0xff]
    %v56 = vld [vmem:[#allocation5 + $0x18] sm:$0xff]
    %v57 = vld [vmem:[#allocation5 + $0x20] sm:$0xff]
    %v58 = vld [vmem:[#allocation5 + $0x28] sm:$0xff]
    %v59 = vld [vmem:[#allocation5 + $0x30] sm:$0xff]
    %v60 = vld [vmem:[#allocation5 + $0x38] sm:$0xff]
    %v61 = vld [vmem:[#allocation5 + $0x40] sm:$0xff]
    %v62 = vld [vmem:[#allocation5 + $0x48] sm:$0xff]
    %v63 = vld [vmem:[#allocation5 + $0x50] sm:$0xff]
    %v64 = vld [vmem:[#allocation5 + $0x58] sm:$0xff]
    %v65 = vld [vmem:[#allocation5 + $0x60] sm:$0xff]
    %v66 = vld [vmem:[#allocation5 + $0x68] sm:$0xff]
    %v67 = vld [vmem:[#allocation5 + $0x70] sm:$0xff]
    %v68 = vld [vmem:[#allocation5 + $0x78] sm:$0xff]
    %69 = vmatprep.subr.mxu0 0.0
    %70 = vmatpush1.msra.mxu0 %v53
    %71 = vmatprep.subr.mxu0 0.0
    %72 = vmatpush1.msra.mxu0 %v54
    %73 = vmatprep.subr.mxu0 0.0
    %74 = vmatpush1.msra.mxu0 %v55
    %75 = vmatprep.subr.mxu0 0.0
    %76 = vmatpush1.msra.mxu0 %v56
    %77 = vmatprep.subr.mxu0 0.0
    %78 = vmatpush1.msra.mxu0 %v57
    %79 = vmatprep.subr.mxu0 0.0
    %80 = vmatpush1.msra.mxu0 %v58
    %81 = vmatprep.subr.mxu0 0.0
    %82 = vmatpush1.msra.mxu0 %v59
    %83 = vmatprep.subr.mxu0 0.0
    %84 = vmatpush1.msra.mxu0 %v60
    %85 = vmatprep.subr.mxu0 0.0
    %86 = vmatpush1.msra.mxu0 %v61
    %87 = vmatprep.subr.mxu0 0.0
    %88 = vmatpush1.msra.mxu0 %v62
    %89 = vmatprep.subr.mxu0 0.0
    %90 = vmatpush1.msra.mxu0 %v63
    %91 = vmatprep.subr.mxu0 0.0
    %92 = vmatpush1.msra.mxu0 %v64
    %93 = vmatprep.subr.mxu0 0.0
    %94 = vmatpush1.msra.mxu0 %v65
    %95 = vmatprep.subr.mxu0 0.0
    %96 = vmatpush1.msra.mxu0 %v66
    %97 = vmatprep.subr.mxu0 0.0
    %98 = vmatpush1.msra.mxu0 %v67
    %99 = vmatprep.subr.mxu0 0.0
    %100 = vmatpush1.msra.mxu0 %v68
    %101 = vmatprep.subr.mxu0 0.0
    %102 = vmatpush1.msra.mxu0 0.0
    %103 = vmatprep.subr.mxu0 0.0
    %104 = vmatpush1.msra.mxu0 0.0
    %105 = vmatprep.subr.mxu0 0.0
    %106 = vmatpush1.msra.mxu0 0.0
    %107 = vmatprep.subr.mxu0 0.0
    %108 = vmatpush1.msra.mxu0 0.0
    %109 = vmatprep.subr.mxu0 0.0
    %110 = vmatpush1.msra.mxu0 0.0
    %111 = vmatprep.subr.mxu0 0.0
    %112 = vmatpush1.msra.mxu0 0.0
    %113 = vmatprep.subr.mxu0 0.0
    %114 = vmatpush1.msra.mxu0 0.0
    %115 = vmatprep.subr.mxu0 0.0
    %116 = vmatpush1.msra.mxu0 0.0
    %117 = vmatprep.subr.mxu0 0.0
    %118 = vmatpush1.msra.mxu0 0.0
    %119 = vmatprep.subr.mxu0 0.0
    %120 = vmatpush1.msra.mxu0 0.0
    %121 = vmatprep.subr.mxu0 0.0
    %122 = vmatpush1.msra.mxu0 0.0
    %123 = vmatprep.subr.mxu0 0.0
    %124 = vmatpush1.msra.mxu0 0.0
    %125 = vmatprep.subr.mxu0 0.0
    %126 = vmatpush1.msra.mxu0 0.0
    %127 = vmatprep.subr.mxu0 0.0
    %128 = vmatpush1.msra.mxu0 0.0
    %129 = vmatprep.subr.mxu0 0.0
    %130 = vmatpush1.msra.mxu0 0.0
    %131 = vmatprep.subr.mxu0 0.0
    %132 = vmatpush1.msra.mxu0 0.0
    %133 = vmatprep.mubr.f32.mxu0 0.0
    %134 = vmatmul.mubr.f32.gmra.mrb[0].mxu0 %v51
    %v135 = vpop.f32.mrb[0].mxu0
    %v136 = vadd.f32 0.0, %v135
    %v137 = vpop.f32.mrb[0].mxu0
    %138 = vmatprep.mubr.f32.mxu0 0.0
    %139 = vmatmul.mubr.f32.gmra.mrb[0].mxu0 %v52
    %v140 = vpop.f32.mrb[0].mxu0
    %v141 = vadd.f32 0.0, %v140
    %v142 = vpop.f32.mrb[0].mxu0
    %143 = vdwg.mxu0
    %v144 = vadd.f32 %v49, %v136
    %v145 = vadd.f32 %v50, %v141
    %146 = vst [vmem:[#allocation7] sm:$0xff] %v144
    %147 = vst [vmem:[#allocation7 + $0x8] sm:$0xff] %v145
    // Predicated region
    $region26: #{tpu_custom_call.1} parent=1 // pred_check
      %p148 = pneg %p43
    $region27: #{tpu_custom_call.1} parent=1 // pred_check_branch
      %150 = sbr.rel (%p148) target = $region29
    $region28: #{tpu_custom_call.1} parent=1 // pred_region
      %v151 = vld [vmem:[#allocation7] sm:$0xff]
      %v152 = vld [vmem:[#allocation7 + $0x8] sm:$0xff]
      %v153 = vld [vmem:[%s2] sm:$0x1]
      %v155 = vlaneseq
      %v156 = vshrl.u32 %v155, 7
      %v157 = vsub.s32 0, %v156
      %v158 = vrot.slane %v153, %v157
      %v160 = vadd.f32 %v151, %v158
      %v161 = vadd.f32 %v152, %v158
      %162 = vst [vmem:[#allocation7] sm:$0xff] %v160
      %163 = vst [vmem:[#allocation7 + $0x8] sm:$0xff] %v161
    $region29: #{tpu_custom_call.1} parent=1 // pred_fallthru
      _
    // Predicated region
    $region30: #{tpu_custom_call.1} parent=1 // pred_check
      _
    $region31: #{tpu_custom_call.1} parent=1 // pred_check_branch
      %165 = sbr.rel (0) target = $region33
    $region32: #{tpu_custom_call.1} parent=1 // pred_region
      %s167 = ssub.s32 256, 256
      %168 = vsyncadd [#allocation4], %s167
      %s169 = sshll.u32 [#allocation7], 4
      %s170 = int_to_ptr.vmem [resolvable:$true] %s169
      %175 = dma.vmem_to_hbm [thread:$0]  %s170, 256, %s3, [#allocation4], 128, 128, 8
    $region33: #{tpu_custom_call.1} parent=1 // pred_fallthru
      _
    // Predicated region
    $region34: #{tpu_custom_call.1} parent=1 // pred_check
      _
    $region35: #{tpu_custom_call.1} parent=1 // pred_check_branch
      %177 = sbr.rel (0) target = $region37
    $region36: #{tpu_custom_call.1} parent=1 // pred_region
      %178 = dma.done [#allocation4], 256
    $region37: #{tpu_custom_call.1} parent=1 // pred_fallthru
      _
    %179 = vsyncpa [#allocation3], 1
    %180 = vsyncpa [#allocation6], 1
    %181 = vsyncpa [#allocation4], 1

</llo_original>
